<compile_context>
chip_gen: v5e
topology: v5e:2x2
jax: 0.10.0
libtpu: 0.0.40
codegen_flags: <defaults>
</compile_context>

<pallas_src>
import functools

import jax
import jax.numpy as jnp
from jax.experimental import pallas as pl
from jax.experimental.pallas import tpu as pltpu

# VENOM sparsity parameters (from the benchmark script)
VENOM_V = 64
VENOM_N = 2
VENOM_M = 8

# Tile candidates (largest first). Conservative maxima so the double-buffered
# footprint (~7 MiB worst case: tm=512, tn=1024, tk=512) fits every TPU
# generation, including v7x's 64 MiB per-TensorCore VMEM.
_TM_CANDIDATES = (512, 256, 128, 64, 32, 16)
_TN_CANDIDATES = (1024, 512, 256, 128)
_TK_CANDIDATES = (512, 256, 128)


def _round_up(a, b):
    return (a + b - 1) // b * b


def _pick_tile(dim, candidates, min_align):
    """Return (tile, padded_dim): largest candidate whose padding waste over the
    min-aligned dim is <= ~12.5%, else the largest exact divisor."""
    dim_min = _round_up(max(dim, 1), min_align)
    for c in candidates:
        pad = _round_up(dim_min, c)
        if pad - dim_min <= dim_min // 8:
            return c, pad
    for c in candidates:
        if dim_min % c == 0:
            return c, dim_min
    return min_align, dim_min


def _largest_divisor(dim, candidates, fallback):
    for c in candidates:
        if dim % c == 0:
            return c
    return fallback


def _compact_last_dim(a, m):
    """Keep positions {0, 2} of every group of `m` along the last axis (2:8 -> K/4)."""
    *lead, k = a.shape
    assert k % m == 0
    a = a.reshape(*lead, k // m, m)
    a = a[..., 0:3:2]                      # static strided slice -> lanes 0 and 2
    return a.reshape(*lead, (k // m) * 2)


def _venom_linear_kernel(x_ref, wt_ref, b_ref, o_ref, acc_ref):
    """One (i, j, k) grid step of out = x_c @ W_c.T + bias.

    acc_ref is a resident f32 VMEM scratch accumulator; bias is folded into its
    initialization at k == 0; the bf16 output tile is written once at the last k.
    """
    k = pl.program_id(2)

    @pl.when(k == 0)
    def _():
        acc_ref[...] = jnp.broadcast_to(b_ref[...], acc_ref.shape)

    acc_ref[...] += jnp.dot(
        x_ref[...], wt_ref[...], preferred_element_type=jnp.float32
    )

    @pl.when(k == pl.num_programs(2) - 1)
    def _():
        o_ref[...] = acc_ref[...].astype(o_ref.dtype)


def prepare_venom_weight(weight, bias, *, m=VENOM_M, v=VENOM_V):
    """One-time weight prep (module-construction time, not per forward).

    weight: (out_features, in_features) dense weight (torch Linear convention)
    bias:   (out_features,)
    Returns:
      wt_pad: (k_pad, n_pad) bf16  -- compacted, transposed, zero-padded weight
      b_pad:  (1, n_pad)    f32    -- zero-padded bias row
    with k_pad, n_pad multiples of 128 chosen to match the forward's tiles.
    """
    out_f, in_f = weight.shape
    assert out_f % v == 0, "out_features must be divisible by v"
    assert in_f % m == 0, "in_features must be divisible by m"
    kc = in_f // m * 2
    _, n_pad = _pick_tile(out_f, _TN_CANDIDATES, 128)
    _, k_pad = _pick_tile(kc, _TK_CANDIDATES, 128)

    w_c = _compact_last_dim(weight, m)                       # (N, Kc)
    wt = jnp.swapaxes(w_c, 0, 1).astype(jnp.bfloat16)        # (Kc, N)
    wt = jnp.pad(wt, ((0, k_pad - kc), (0, n_pad - out_f)))
    b = bias.astype(jnp.float32).reshape(1, out_f)
    b = jnp.pad(b, ((0, 0), (0, n_pad - out_f)))
    return wt, b


def venom_masked_linear(x, wt_pad, bias_pad, *, out_features, m=VENOM_M,
                        out_dtype=jnp.bfloat16):
    """Forward: x @ (W * mask).T + bias, using the compacted/padded weight.

    x:        (..., in_features)
    wt_pad:   (k_pad, n_pad) bf16 from prepare_venom_weight
    bias_pad: (1, n_pad) f32 from prepare_venom_weight
    """
    in_f = x.shape[-1]
    assert in_f % m == 0
    kc = in_f // m * 2
    k_pad, n_pad = wt_pad.shape
    assert kc <= k_pad and out_features <= n_pad
    batch_shape = x.shape[:-1]

    # Cast to bf16 first (halves compaction write traffic), then compact.
    xm = _compact_last_dim(x.astype(jnp.bfloat16).reshape(-1, in_f), m)  # (M, Kc)
    m_dim = xm.shape[0]

    # Tile selection: tm from padding-waste policy; tn/tk are divisors of the
    # prep-time padded weight dims (so the weight never needs re-padding).
    tm, m_pad = _pick_tile(m_dim, _TM_CANDIDATES, 16)
    tn = _largest_divisor(n_pad, _TN_CANDIDATES, 128)
    tk = _largest_divisor(k_pad, _TK_CANDIDATES, 128)

    # Keep both v7x TensorCores busy: need >= 2 parallel (i, j) grid steps.
    while (m_pad // tm) * (n_pad // tn) < 2:
        if tn >= 256:
            tn //= 2
        elif tm >= 32:
            tm //= 2
        else:
            break

    if (m_pad, k_pad) != (m_dim, kc):
        xm = jnp.pad(xm, ((0, m_pad - m_dim), (0, k_pad - kc)))

    grid = (m_pad // tm, n_pad // tn, k_pad // tk)

    out_bytes = jnp.dtype(out_dtype).itemsize
    cost = pl.CostEstimate(
        flops=2 * m_pad * n_pad * k_pad,
        transcendentals=0,
        bytes_accessed=(m_pad * k_pad * 2 + k_pad * n_pad * 2
                        + m_pad * n_pad * out_bytes + n_pad * 4),
    )

    out = pl.pallas_call(
        _venom_linear_kernel,
        out_shape=jax.ShapeDtypeStruct((m_pad, n_pad), out_dtype),
        grid_spec=pltpu.PrefetchScalarGridSpec(
            num_scalar_prefetch=0,
            grid=grid,
            in_specs=[
                pl.BlockSpec((tm, tk), lambda i, j, k: (i, k)),   # x_c  (bf16)
                pl.BlockSpec((tk, tn), lambda i, j, k: (k, j)),   # W_c.T (bf16)
                pl.BlockSpec((1, tn), lambda i, j, k: (0, j)),    # bias  (f32)
            ],
            out_specs=pl.BlockSpec((tm, tn), lambda i, j, k: (i, j)),
            scratch_shapes=[pltpu.VMEM((tm, tn), jnp.float32)],   # f32 accumulator
        ),
        compiler_params=pltpu.CompilerParams(
            dimension_semantics=("parallel", "parallel", "arbitrary"),
            vmem_limit_bytes=32 * 1024 * 1024,
        ),
        cost_estimate=cost,
    )(xm, wt_pad, bias_pad)

    out = out[:m_dim, :out_features]
    return out.reshape(*batch_shape, out_features)


if __name__ == "__main__":
    key = jax.random.PRNGKey(0)
    k_x, k_w, k_b = jax.random.split(key, 3)

    # Small shapes consistent with the module constraints:
    #   out_features % v(=64) == 0, in_features % m(=8) == 0.
    batch, seq = 2, 8
    in_features, out_features = 256, 64

    x = jax.random.normal(k_x, (batch, seq, in_features), dtype=jnp.float32)
    weight = jax.random.normal(k_w, (out_features, in_features), dtype=jnp.float32)
    bias = jax.random.normal(k_b, (out_features,), dtype=jnp.float32)

    wt_pad, b_pad = prepare_venom_weight(weight, bias)

    fwd = jax.jit(functools.partial(venom_masked_linear, out_features=out_features))
    out = fwd(x, wt_pad, b_pad)
    jax.block_until_ready(out)
    assert out.shape == (batch, seq, out_features)
    out_f32 = out.astype(jnp.float32)

    # Tight check vs a reference with the same bf16 operand rounding as the kernel.
    xc = _compact_last_dim(x, VENOM_M).astype(jnp.bfloat16).astype(jnp.float32)
    wc = _compact_last_dim(weight, VENOM_M).astype(jnp.bfloat16).astype(jnp.float32)
    ref_bf16 = xc @ jnp.swapaxes(wc, 0, 1) + bias
    assert jnp.allclose(out_f32, ref_bf16, atol=1e-1, rtol=2e-2), "mismatch vs bf16 reference"

    # Loose semantics check vs the exact f32 masked dense matmul of the module.
    col = jnp.arange(in_features)
    mask = ((col % VENOM_M == 0) | (col % VENOM_M == 2)).astype(weight.dtype)
    ref_f32 = x @ (weight * mask[None, :]).T + bias
    assert jnp.allclose(out_f32, ref_f32, atol=0.5, rtol=5e-2), "mismatch vs f32 reference"

    print("KERNEL_OK")
</pallas_src>

<mosaic_0001>
module attributes {stable_mosaic.version = 11 : i64} {
  func.func @_venom_linear_kernel(%arg0: i32, %arg1: i32, %arg2: i32, %arg3: memref<16x128xbf16, #tpu.memory_space<vmem>>, %arg4: memref<128x128xbf16, #tpu.memory_space<vmem>>, %arg5: memref<1x128xf32, #tpu.memory_space<vmem>>, %arg6: memref<16x128xbf16, #tpu.memory_space<vmem>>, %arg7: memref<16x128xf32, #tpu.memory_space<vmem>>) attributes {dimension_semantics = [#tpu.dimension_semantics<parallel>, #tpu.dimension_semantics<parallel>, #tpu.dimension_semantics<arbitrary>], iteration_bounds = array<i64: 1, 1, 1>, scalar_prefetch = 0 : i64, scratch_operands = 1 : i64, tpu.core_type = #tpu.core_type<tc>, window_params = [{transform_indices = @transform_0, window_bounds = array<i64: 16, 128>}, {transform_indices = @transform_1, window_bounds = array<i64: 128, 128>}, {transform_indices = @transform_2, window_bounds = array<i64: 1, 128>}, {transform_indices = @transform_3, window_bounds = array<i64: 16, 128>}]} {
    %c0_i32 = arith.constant 0 : i32
    %0 = arith.cmpi eq, %arg2, %c0_i32 : i32
    %1 = arith.extui %0 : i1 to i32
    %c0_i32_0 = arith.constant 0 : i32
    %2 = arith.cmpi ne, %1, %c0_i32_0 : i32
    scf.if %2 {
      %c0_10 = arith.constant 0 : index
      %c0_11 = arith.constant 0 : index
      %12 = vector.load %arg5[%c0_10, %c0_11] : memref<1x128xf32, #tpu.memory_space<vmem>>, vector<1x128xf32>
      %13 = vector.shape_cast %12 : vector<1x128xf32> to vector<1x128xf32>
      %14 = vector.broadcast %13 : vector<1x128xf32> to vector<16x128xf32>
      %c0_12 = arith.constant 0 : index
      %c0_13 = arith.constant 0 : index
      %15 = vector.load %arg7[%c0_12, %c0_13] : memref<16x128xf32, #tpu.memory_space<vmem>>, vector<16x128xf32>
      tpu.vector_store %arg7[%c0_12, %c0_13], %14 {strides = array<i32>} : memref<16x128xf32, #tpu.memory_space<vmem>>, vector<16x128xf32>,
    } else {
    }
    %c0 = arith.constant 0 : index
    %c0_1 = arith.constant 0 : index
    %3 = vector.load %arg7[%c0, %c0_1] : memref<16x128xf32, #tpu.memory_space<vmem>>, vector<16x128xf32>
    %c0_2 = arith.constant 0 : index
    %c0_3 = arith.constant 0 : index
    %4 = vector.load %arg3[%c0_2, %c0_3] : memref<16x128xbf16, #tpu.memory_space<vmem>>, vector<16x128xbf16>
    %c0_4 = arith.constant 0 : index
    %c0_5 = arith.constant 0 : index
    %5 = vector.load %arg4[%c0_4, %c0_5] : memref<128x128xbf16, #tpu.memory_space<vmem>>, vector<128x128xbf16>
    %cst = arith.constant dense<0.000000e+00> : vector<16x128xf32>
    %6 = tpu.matmul %4, %5, %cst {dimension_numbers = #tpu.dot_dimension_numbers<[1], [0], [0], [1], [0, 0, 1, 1], [], []>} : vector<16x128xbf16>, vector<128x128xbf16>, vector<16x128xf32> -> vector<16x128xf32>
    %7 = arith.addf %3, %6 : vector<16x128xf32>
    %c0_6 = arith.constant 0 : index
    %c0_7 = arith.constant 0 : index
    %8 = vector.load %arg7[%c0_6, %c0_7] : memref<16x128xf32, #tpu.memory_space<vmem>>, vector<16x128xf32>
    tpu.vector_store %arg7[%c0_6, %c0_7], %7 {strides = array<i32>} : memref<16x128xf32, #tpu.memory_space<vmem>>, vector<16x128xf32>,
    %c0_i32_8 = arith.constant 0 : i32
    %9 = arith.cmpi eq, %arg2, %c0_i32_8 : i32
    %10 = arith.extui %9 : i1 to i32
    %c0_i32_9 = arith.constant 0 : i32
    %11 = arith.cmpi ne, %10, %c0_i32_9 : i32
    scf.if %11 {
      %c0_10 = arith.constant 0 : index
      %c0_11 = arith.constant 0 : index
      %12 = vector.load %arg7[%c0_10, %c0_11] : memref<16x128xf32, #tpu.memory_space<vmem>>, vector<16x128xf32>
      %13 = arith.truncf %12 : vector<16x128xf32> to vector<16x128xbf16>
      %c0_12 = arith.constant 0 : index
      %c0_13 = arith.constant 0 : index
      %14 = vector.load %arg6[%c0_12, %c0_13] : memref<16x128xbf16, #tpu.memory_space<vmem>>, vector<16x128xbf16>
      tpu.vector_store %arg6[%c0_12, %c0_13], %13 {strides = array<i32>} : memref<16x128xbf16, #tpu.memory_space<vmem>>, vector<16x128xbf16>,
    } else {
    }
    return
  }
  func.func @transform_0(%arg0: i32, %arg1: i32, %arg2: i32) -> (i32, i32) {
    %c0_i32 = arith.constant 0 : i32
    return %arg0, %arg2 : i32, i32
  }
  func.func @transform_1(%arg0: i32, %arg1: i32, %arg2: i32) -> (i32, i32) {
    %c0_i32 = arith.constant 0 : i32
    return %arg2, %arg1 : i32, i32
  }
  func.func @transform_2(%arg0: i32, %arg1: i32, %arg2: i32) -> (i32, i32) {
    %c0_i32 = arith.constant 0 : i32
    %c0_i32_0 = arith.constant 0 : i32
    return %c0_i32, %arg1 : i32, i32
  }
  func.func @transform_3(%arg0: i32, %arg1: i32, %arg2: i32) -> (i32, i32) {
    %c0_i32 = arith.constant 0 : i32
    return %arg0, %arg1 : i32, i32
  }
}

</mosaic_0001>

<llo_original>
// kernel: venom_masked_linear.1
$region0: #{venom_masked_linear.1}
  #allocation0 [shape = 'u32[]', space=smem, size = 0x4, offset = 0x4, fixed_abs, tag = 'smem constant byte address 0x4 - core index']
  #allocation1 [shape = 'u32[72,128]{1,0:T(1,128)}', space=vmem, size = 0x9000, scoped, tag = 'internal scratch']
  #allocation2 [shape = 'f32[16,128]{1,0:T(8,128)}', space=vmem, size = 0x2000, scoped, tag = 'scratch operand']
  %s0 = inlined_call_operand.vmem [shape: bf16[16,128], index: 0, kind: input, shape index: {}]
  %s1 = inlined_call_operand.vmem [shape: bf16[128,128], index: 1, kind: input, shape index: {}]
  %s2 = inlined_call_operand.vmem [shape: f32[1,128], index: 2, kind: input, shape index: {}]
  %s3 = inlined_call_operand.vmem [shape: bf16[16,128], index: 3, kind: output, shape index: {}]
  %s4 = sld [smem:[#allocation0]]
  $region30: #{venom_masked_linear.1} parent=0
    _
  %s6 = ssub.s32 1, %s4
  %s7 = scalar_select 0, %s6, %s4
  // Predicated region
  $region2: #{venom_masked_linear.1} parent=0 // pred_check
    _
  $region3: #{venom_masked_linear.1} parent=0 // pred_check_branch
    %9 = sbr.rel (0) target = $region5
  $region4: #{venom_masked_linear.1} parent=0 // pred_region
    _
  $region5: #{venom_masked_linear.1} parent=0 // pred_fallthru
    _
  // Predicated region
  $region6: #{venom_masked_linear.1} parent=0 // pred_check
    _
  $region7: #{venom_masked_linear.1} parent=0 // pred_check_branch
    %11 = sbr.rel (0) target = $region9
  $region8: #{venom_masked_linear.1} parent=0 // pred_region
    _
  $region9: #{venom_masked_linear.1} parent=0 // pred_fallthru
    _
  // Predicated region
  $region10: #{venom_masked_linear.1} parent=0 // pred_check
    _
  $region11: #{venom_masked_linear.1} parent=0 // pred_check_branch
    %13 = sbr.rel (0) target = $region13
  $region12: #{venom_masked_linear.1} parent=0 // pred_region
    _
  $region13: #{venom_masked_linear.1} parent=0 // pred_fallthru
    _
  %p14 = scmp.eq.s32.totalorder 0, 0
  // Predicated region
  $region14: #{venom_masked_linear.1} parent=0 // pred_check
    %p15 = pneg %p14
  $region15: #{venom_masked_linear.1} parent=0 // pred_check_branch
    %17 = sbr.rel (%p15) target = $region17
  $region16: #{venom_masked_linear.1} parent=0 // pred_region
    %v18 = vld [vmem:[%s2] sm:$0x1]
    %v20 = vperm.slane %v18, 0
    %22 = vst [vmem:[#allocation2] sm:$0xff] %v20
    %23 = vst [vmem:[#allocation2 + $0x8] sm:$0xff] %v20
  $region17: #{venom_masked_linear.1} parent=0 // pred_fallthru
    _
  %v24 = vld [vmem:[#allocation2] sm:$0xff]
  %v25 = vld [vmem:[#allocation2 + $0x8] sm:$0xff]
  %v26 = vld [vmem:[%s0] sm:$0xf]
  %v27 = vld [vmem:[%s0 + $0x4] sm:$0xf]
  %v28 = vld [vmem:[%s1] sm:$0xf]
  %v29 = vld [vmem:[%s1 + $0x4] sm:$0xf]
  %v30 = vld [vmem:[%s1 + $0x8] sm:$0xf]
  %v31 = vld [vmem:[%s1 + $0xc] sm:$0xf]
  %v32 = vld [vmem:[%s1 + $0x10] sm:$0xf]
  %v33 = vld [vmem:[%s1 + $0x14] sm:$0xf]
  %v34 = vld [vmem:[%s1 + $0x18] sm:$0xf]
  %v35 = vld [vmem:[%s1 + $0x1c] sm:$0xf]
  %v36 = vld [vmem:[%s1 + $0x20] sm:$0xf]
  %v37 = vld [vmem:[%s1 + $0x24] sm:$0xf]
  %v38 = vld [vmem:[%s1 + $0x28] sm:$0xf]
  %v39 = vld [vmem:[%s1 + $0x2c] sm:$0xf]
  %v40 = vld [vmem:[%s1 + $0x30] sm:$0xf]
  %v41 = vld [vmem:[%s1 + $0x34] sm:$0xf]
  %v42 = vld [vmem:[%s1 + $0x38] sm:$0xf]
  %v43 = vld [vmem:[%s1 + $0x3c] sm:$0xf]
  %v46 = vunpack.c.l.b16 %v26
  %v47 = vunpack.c.l.b16 %v27
  %v48 = vpack.c.b16 %v47, %v46
  %v66 = vunpack.c.l.b16 %v28
  %v67 = vunpack.c.l.b16 %v29
  %v68 = vunpack.c.l.b16 %v30
  %v69 = vunpack.c.l.b16 %v31
  %v70 = vunpack.c.l.b16 %v32
  %v71 = vunpack.c.l.b16 %v33
  %v72 = vunpack.c.l.b16 %v34
  %v73 = vunpack.c.l.b16 %v35
  %v74 = vunpack.c.l.b16 %v36
  %v75 = vunpack.c.l.b16 %v37
  %v76 = vunpack.c.l.b16 %v38
  %v77 = vunpack.c.l.b16 %v39
  %v78 = vunpack.c.l.b16 %v40
  %v79 = vunpack.c.l.b16 %v41
  %v80 = vunpack.c.l.b16 %v42
  %v81 = vunpack.c.l.b16 %v43
  %v82 = vpack.c.b16 %v67, %v66
  %v83 = vpack.c.b16 %v69, %v68
  %v84 = vpack.c.b16 %v71, %v70
  %v85 = vpack.c.b16 %v73, %v72
  %v86 = vpack.c.b16 %v75, %v74
  %v87 = vpack.c.b16 %v77, %v76
  %v88 = vpack.c.b16 %v79, %v78
  %v89 = vpack.c.b16 %v81, %v80
  %98 = vmatpush.bf16.msra.mxu0 %v89
  %99 = vmatpush.bf16.msra.mxu0 %v88
  %100 = vmatpush.bf16.msra.mxu0 %v87
  %101 = vmatpush.bf16.msra.mxu0 %v86
  %102 = vmatpush.bf16.msra.mxu0 %v85
  %103 = vmatpush.bf16.msra.mxu0 %v84
  %104 = vmatpush.bf16.msra.mxu0 %v83
  %105 = vmatpush.bf16.msra.mxu0 %v82
  %106 = vmatmul.bf16.gmra.mxu0 %v48
  %v107 = vpop.f32.mrf.mxu0
  %v108 = vadd.f32 0.0, %v107
  %v109 = vpop.f32.mrf.mxu0
  %v110 = vadd.f32 0.0, %v109
  %111 = vdwg.mxu0
  %v112 = vadd.f32 %v24, %v108
  %v113 = vadd.f32 %v25, %v110
  %114 = vst [vmem:[#allocation2] sm:$0xff] %v112
  %115 = vst [vmem:[#allocation2 + $0x8] sm:$0xff] %v113
  // Predicated region
  $region18: #{venom_masked_linear.1} parent=0 // pred_check
    %p116 = pneg %p14
  $region19: #{venom_masked_linear.1} parent=0 // pred_check_branch
    %118 = sbr.rel (%p116) target = $region21
  $region20: #{venom_masked_linear.1} parent=0 // pred_region
    %v119 = vld [vmem:[#allocation2] sm:$0xff]
    %v120 = vld [vmem:[#allocation2 + $0x8] sm:$0xff]
    %v121 = vpack.c.bf16 %v119, %v119
    %v122 = vpack.c.bf16 %v120, %v120
    %123 = vst [vmem:[%s3] sm:$0xf] %v121
    %124 = vst [vmem:[%s3 + $0x4] sm:$0xf] %v122
  $region21: #{venom_masked_linear.1} parent=0 // pred_fallthru
    _
  // Predicated region
  $region22: #{venom_masked_linear.1} parent=0 // pred_check
    _
  $region23: #{venom_masked_linear.1} parent=0 // pred_check_branch
    %126 = sbr.rel (0) target = $region25
  $region24: #{venom_masked_linear.1} parent=0 // pred_region
    _
  $region25: #{venom_masked_linear.1} parent=0 // pred_fallthru
    _
  // Predicated region
  $region26: #{venom_masked_linear.1} parent=0 // pred_check
    _
  $region27: #{venom_masked_linear.1} parent=0 // pred_check_branch
    %128 = sbr.rel (0) target = $region29
  $region28: #{venom_masked_linear.1} parent=0 // pred_region
    _
  $region29: #{venom_masked_linear.1} parent=0 // pred_fallthru
    _

</llo_original>
